<compile_context>
chip_gen: v6e
topology: v6e:2x2x1
jax: 0.10.0
libtpu: 0.0.40
codegen_flags: <defaults>
</compile_context>

<pallas_src>
import functools

import jax
import jax.numpy as jnp
import numpy as np
from jax.experimental import pallas as pl
from jax.experimental.pallas import tpu as pltpu


def transformer_kernel(x_ref, xq_ref, wqkv_ref, wff_ref, bff_ref, e_ref, g_ref,
                       out_ref, *, N, S, CA, inv_scale):
    """One batch element per grid step. Channels in sublanes, spatial in lanes."""
    P = N * S                     # lanes per x-slab (128 in the test config)
    X = x_ref[0]                  # (c_in, 3*N*S)  lane = x*(N*S) + p*S + s
    Xq = xq_ref[0]                # (c_in, 3*N)    lane = x*N + p  (s = 0 slice)
    Wqkv = wqkv_ref[...]          # (3*CA, c_in) : rows [0:CA)=Wq@We, [CA:3CA)=[Wk@We; Wv@We]
    Wff = wff_ref[...]            # (2*CA, CA)   : rows [0:CA)=Wf1, [CA:2CA)=Wf2
    bff = bff_ref[...]            # (2*CA, 1)
    E = e_ref[...]                # (3*N, 3*N*S)  E[r, l] = 1 iff l // S == r
    G = g_ref[...]                # (N*S, N*S)    G[i, j] = 1 iff i // S == j // S

    # fused k / v projections (vnn_e folded into the weights)
    KV = jnp.dot(Wqkv[CA:3 * CA], X, preferred_element_type=jnp.float32)   # (2CA, 3NS)
    K = KV[0:CA]
    V = KV[CA:2 * CA]

    # fused q projection on the s=0 columns, then broadcast over (x, s) via E
    Q = jnp.dot(Wqkv[0:CA], Xq, preferred_element_type=jnp.float32)        # (CA, 3N)
    QB = jnp.dot(Q, E, preferred_element_type=jnp.float32)                 # (CA, 3NS)

    # attn0[a, p*S+s] = sum_x q[a,x,p] * k[a,x,p,s]  (three lane-aligned slabs)
    QK = QB * K
    attn0 = QK[:, 0:P] + QK[:, P:2 * P] + QK[:, 2 * P:3 * P]               # (CA, N*S)

    # attn_fwd: 1x1 conv -> ReLU -> 1x1 conv (per-lane channel matmuls)
    h = jnp.maximum(
        jnp.dot(Wff[0:CA], attn0, preferred_element_type=jnp.float32) + bff[0:CA], 0.0)
    logits = (jnp.dot(Wff[CA:2 * CA], h, preferred_element_type=jnp.float32)
              + bff[CA:2 * CA]) * inv_scale                                # (CA, N*S)

    # softmax over s (groups of S consecutive lanes): exact row-max shift,
    # segment-sum + broadcast via one matmul with G, EUP reciprocal.
    m = jnp.max(logits, axis=-1, keepdims=True)                            # (CA, 1)
    pexp = jnp.exp(logits - m)                                             # (CA, N*S)
    den = jnp.dot(pexp, G, preferred_element_type=jnp.float32)             # (CA, N*S)
    w = pexp * pl.reciprocal(den, approx=True)                             # (CA, N*S)

    # resi[a, x*N+p] = sum_s w[a,p,s] * v[a,x,p,s]   (contract with E^T on the MXU)
    wB = jnp.concatenate([w, w, w], axis=1)                                # (CA, 3NS)
    resi = jax.lax.dot_general(wB * V, E,
                               dimension_numbers=(((1,), (1,)), ((), ())),
                               preferred_element_type=jnp.float32)         # (CA, 3N)
    out_ref[0] = resi.astype(out_ref.dtype)


def transformer_base_forward(group_xyz, group_fts, query_xyz, params):
    # group_xyz / query_xyz are unused (use_geometry=False, use_position=False) but kept
    # to mirror the PyTorch forward signature.
    del group_xyz, query_xyz
    b, c_in, three, N, S = group_fts.shape
    assert three == 3
    We, Wq, Wk, Wv, Wf1, bf1, Wf2, bf2 = params
    CA = Wq.shape[0]
    inv_scale = float(1.0 / np.sqrt(CA))        # scale_mode == 'dimfts'
    L = 3 * N * S                               # 384 (lane-dense, 3 x 128)
    P = N * S                                   # 128
    R = 3 * N                                   # 48

    # Free reshape of the native conv layout (no HBM transpose): lane = x*(N*S) + p*S + s.
    X = group_fts.reshape(b, c_in, L)
    # Tiny s=0 slice for the query path (b * c_in * 3N elements).
    Xq = group_fts[..., 0].reshape(b, c_in, R)

    # Fuse vnn_e into the q/k/v projections and pack all projection weights into one slab.
    Wqkv = jnp.concatenate([Wq @ We, Wk @ We, Wv @ We], axis=0)            # (3*CA, c_in)
    Wff = jnp.concatenate([Wf1, Wf2], axis=0)                              # (2*CA, CA)
    bff = jnp.concatenate([bf1.reshape(CA, 1), bf2.reshape(CA, 1)], axis=0)  # (2*CA, 1)

    # Constant 0/1 matrices: E expands (3N) -> (3N*S) (and its transpose reduces over S);
    # G sums within each S-group and broadcasts the sum back to every lane of the group.
    lane = np.arange(L)
    E = jnp.asarray((lane[None, :] // S == np.arange(R)[:, None]).astype(np.float32))
    pl_ = np.arange(P)
    G = jnp.asarray((pl_[:, None] // S == pl_[None, :] // S).astype(np.float32))

    kernel = functools.partial(transformer_kernel, N=N, S=S, CA=CA, inv_scale=inv_scale)
    out = pl.pallas_call(
        kernel,
        out_shape=jax.ShapeDtypeStruct((b, CA, R), jnp.float32),
        grid_spec=pltpu.PrefetchScalarGridSpec(
            num_scalar_prefetch=0,
            grid=(b,),
            in_specs=[
                pl.BlockSpec((1, c_in, L), lambda i: (i, 0, 0)),   # X (native layout)
                pl.BlockSpec((1, c_in, R), lambda i: (i, 0, 0)),   # X at s = 0
                pl.BlockSpec((3 * CA, c_in), lambda i: (0, 0)),    # fused q/k/v weights
                pl.BlockSpec((2 * CA, CA), lambda i: (0, 0)),      # attn_fwd weights
                pl.BlockSpec((2 * CA, 1), lambda i: (0, 0)),       # attn_fwd biases
                pl.BlockSpec((R, L), lambda i: (0, 0)),            # E
                pl.BlockSpec((P, P), lambda i: (0, 0)),            # G
            ],
            out_specs=pl.BlockSpec((1, CA, R), lambda i: (i, 0, 0)),
        ),
        compiler_params=pltpu.CompilerParams(dimension_semantics=("parallel",)),
    )(X, Xq, Wqkv, Wff, bff, E, G)

    # (b, CA, 3*N) with column = x*N + p reshapes for free to the PyTorch (b, CA, 3, N).
    return out.reshape(b, CA, 3, N)


def reference_forward(group_fts, params):
    """Pure-JAX reference mirroring the PyTorch forward semantics."""
    We, Wq, Wk, Wv, Wf1, bf1, Wf2, bf2 = params
    CA = Wq.shape[0]
    emb = jnp.einsum('ec,bcxps->bexps', We, group_fts)
    q = jnp.einsum('ae,bexp->baxp', Wq, emb[..., 0])
    k = jnp.einsum('ae,bexps->baxps', Wk, emb)
    v = jnp.einsum('ae,bexps->baxps', Wv, emb)
    attn = jnp.sum(q[..., None] * k, axis=2)                                # (b, CA, N, S)
    h = jnp.maximum(jnp.einsum('oi,bips->bops', Wf1, attn)
                    + bf1.reshape(1, -1, 1, 1), 0.0)
    logits = jnp.einsum('oi,bips->bops', Wf2, h) + bf2.reshape(1, -1, 1, 1)
    w = jax.nn.softmax(logits / np.sqrt(CA), axis=-1)
    resi = jnp.sum(w[:, :, None, :, :] * v, axis=-1)                        # (b, CA, 3, N)
    return resi


if __name__ == "__main__":
    b, c_in, N, S = 2, 4, 16, 8       # batch, in-channels, npoint, nsample (N*S = 128)
    CE, CA = 8, 8                     # embedding / attention channels

    key = jax.random.PRNGKey(0)
    keys = jax.random.split(key, 12)
    group_fts = jax.random.normal(keys[0], (b, c_in, 3, N, S), jnp.float32)
    group_xyz = jax.random.normal(keys[1], (b, N, S, 3), jnp.float32)       # unused (no geometry/position)
    query_xyz = jax.random.normal(keys[2], (b, N, 3), jnp.float32)          # unused

    def lin(k, shape, fan_in):
        return jax.random.uniform(k, shape, jnp.float32, -1.0, 1.0) / np.sqrt(fan_in)

    We = lin(keys[3], (CE, c_in), c_in)     # vnn_e  VNLinear (no bias)
    Wq = lin(keys[4], (CA, CE), CE)         # vnn_q  VNLinear (no bias)
    Wk = lin(keys[5], (CA, CE), CE)         # vnn_k  VNLinear (no bias)
    Wv = lin(keys[6], (CA, CE), CE)         # vnn_v  VNLinear (no bias)
    Wf1 = lin(keys[7], (CA, CA), CA)        # attn_fwd Conv2d(CA, CA, 1) weight
    bf1 = lin(keys[8], (1, CA), CA)         # attn_fwd Conv2d bias
    Wf2 = lin(keys[9], (CA, CA), CA)
    bf2 = lin(keys[10], (1, CA), CA)
    params = (We, Wq, Wk, Wv, Wf1, bf1, Wf2, bf2)

    # TODO(synk): self.vnn_f and the 'sub'/use_geometry/use_position branches are not exercised
    # by this configuration (vnn_f is never used in the PyTorch forward either).

    out = transformer_base_forward(group_xyz, group_fts, query_xyz, params)
    out = jax.block_until_ready(out)
    assert out.shape == (b, CA, 3, N)

    ref = reference_forward(group_fts, params)
    np.testing.assert_allclose(np.asarray(out), np.asarray(ref), rtol=2e-2, atol=2e-2)
    print("KERNEL_OK")
</pallas_src>

<mosaic_0001>
module attributes {stable_mosaic.version = 11 : i64} {
  func.func @transformer_kernel(%arg0: i32, %arg1: memref<1x4x384xf32, #tpu.memory_space<vmem>>, %arg2: memref<1x4x48xf32, #tpu.memory_space<vmem>>, %arg3: memref<24x4xf32, #tpu.memory_space<vmem>>, %arg4: memref<16x8xf32, #tpu.memory_space<vmem>>, %arg5: memref<16x1xf32, #tpu.memory_space<vmem>>, %arg6: memref<48x384xf32, #tpu.memory_space<vmem>>, %arg7: memref<128x128xf32, #tpu.memory_space<vmem>>, %arg8: memref<1x8x48xf32, #tpu.memory_space<vmem>>) attributes {dimension_semantics = [#tpu.dimension_semantics<parallel>], iteration_bounds = array<i64: 2>, scalar_prefetch = 0 : i64, scratch_operands = 0 : i64, tpu.core_type = #tpu.core_type<tc>, window_params = [{transform_indices = @transform_0, window_bounds = array<i64: 1, 4, 384>}, {transform_indices = @transform_1, window_bounds = array<i64: 1, 4, 48>}, {pipeline_mode = #tpu.pipeline_mode<synchronous>, transform_indices = @transform_2, window_bounds = array<i64: 24, 4>}, {pipeline_mode = #tpu.pipeline_mode<synchronous>, transform_indices = @transform_3, window_bounds = array<i64: 16, 8>}, {pipeline_mode = #tpu.pipeline_mode<synchronous>, transform_indices = @transform_4, window_bounds = array<i64: 16, 1>}, {pipeline_mode = #tpu.pipeline_mode<synchronous>, transform_indices = @transform_5, window_bounds = array<i64: 48, 384>}, {pipeline_mode = #tpu.pipeline_mode<synchronous>, transform_indices = @transform_6, window_bounds = array<i64: 128, 128>}, {transform_indices = @transform_7, window_bounds = array<i64: 1, 8, 48>}]} {
    %c0 = arith.constant 0 : index
    %c0_0 = arith.constant 0 : index
    %c0_1 = arith.constant 0 : index
    %0 = vector.load %arg1[%c0, %c0_0, %c0_1] : memref<1x4x384xf32, #tpu.memory_space<vmem>>, vector<1x4x384xf32>
    %1 = vector.shape_cast %0 : vector<1x4x384xf32> to vector<4x384xf32>
    %c0_2 = arith.constant 0 : index
    %c0_3 = arith.constant 0 : index
    %c0_4 = arith.constant 0 : index
    %2 = vector.load %arg2[%c0_2, %c0_3, %c0_4] : memref<1x4x48xf32, #tpu.memory_space<vmem>>, vector<1x4x48xf32>
    %3 = vector.shape_cast %2 : vector<1x4x48xf32> to vector<4x48xf32>
    %c0_5 = arith.constant 0 : index
    %c0_6 = arith.constant 0 : index
    %4 = vector.load %arg3[%c0_5, %c0_6] : memref<24x4xf32, #tpu.memory_space<vmem>>, vector<24x4xf32>
    %c0_7 = arith.constant 0 : index
    %c0_8 = arith.constant 0 : index
    %5 = vector.load %arg4[%c0_7, %c0_8] : memref<16x8xf32, #tpu.memory_space<vmem>>, vector<16x8xf32>
    %c0_9 = arith.constant 0 : index
    %c0_10 = arith.constant 0 : index
    %6 = vector.load %arg5[%c0_9, %c0_10] : memref<16x1xf32, #tpu.memory_space<vmem>>, vector<16x1xf32>
    %c0_11 = arith.constant 0 : index
    %c0_12 = arith.constant 0 : index
    %7 = vector.load %arg6[%c0_11, %c0_12] : memref<48x384xf32, #tpu.memory_space<vmem>>, vector<48x384xf32>
    %c0_13 = arith.constant 0 : index
    %c0_14 = arith.constant 0 : index
    %8 = vector.load %arg7[%c0_13, %c0_14] : memref<128x128xf32, #tpu.memory_space<vmem>>, vector<128x128xf32>
    %9 = vector.extract_strided_slice %4 {offsets = [8, 0], sizes = [16, 4], strides = [1, 1]} : vector<24x4xf32> to vector<16x4xf32>
    %cst = arith.constant dense<0.000000e+00> : vector<16x384xf32>
    %10 = tpu.matmul %9, %1, %cst {dimension_numbers = #tpu.dot_dimension_numbers<[1], [0], [0], [1], [0, 0, 1, 1], [], []>} : vector<16x4xf32>, vector<4x384xf32>, vector<16x384xf32> -> vector<16x384xf32>
    %11 = vector.extract_strided_slice %10 {offsets = [0, 0], sizes = [8, 384], strides = [1, 1]} : vector<16x384xf32> to vector<8x384xf32>
    %12 = vector.extract_strided_slice %10 {offsets = [8, 0], sizes = [8, 384], strides = [1, 1]} : vector<16x384xf32> to vector<8x384xf32>
    %13 = vector.extract_strided_slice %4 {offsets = [0, 0], sizes = [8, 4], strides = [1, 1]} : vector<24x4xf32> to vector<8x4xf32>
    %cst_15 = arith.constant dense<0.000000e+00> : vector<8x48xf32>
    %14 = tpu.matmul %13, %3, %cst_15 {dimension_numbers = #tpu.dot_dimension_numbers<[1], [0], [0], [1], [0, 0, 1, 1], [], []>} : vector<8x4xf32>, vector<4x48xf32>, vector<8x48xf32> -> vector<8x48xf32>
    %cst_16 = arith.constant dense<0.000000e+00> : vector<8x384xf32>
    %15 = tpu.matmul %14, %7, %cst_16 {dimension_numbers = #tpu.dot_dimension_numbers<[1], [0], [0], [1], [0, 0, 1, 1], [], []>} : vector<8x48xf32>, vector<48x384xf32>, vector<8x384xf32> -> vector<8x384xf32>
    %16 = arith.mulf %15, %11 : vector<8x384xf32>
    %17 = vector.extract_strided_slice %16 {offsets = [0, 0], sizes = [8, 128], strides = [1, 1]} : vector<8x384xf32> to vector<8x128xf32>
    %18 = vector.extract_strided_slice %16 {offsets = [0, 128], sizes = [8, 128], strides = [1, 1]} : vector<8x384xf32> to vector<8x128xf32>
    %19 = arith.addf %17, %18 : vector<8x128xf32>
    %20 = vector.extract_strided_slice %16 {offsets = [0, 256], sizes = [8, 128], strides = [1, 1]} : vector<8x384xf32> to vector<8x128xf32>
    %21 = arith.addf %19, %20 : vector<8x128xf32>
    %22 = vector.extract_strided_slice %5 {offsets = [0, 0], sizes = [8, 8], strides = [1, 1]} : vector<16x8xf32> to vector<8x8xf32>
    %cst_17 = arith.constant dense<0.000000e+00> : vector<8x128xf32>
    %23 = tpu.matmul %22, %21, %cst_17 {dimension_numbers = #tpu.dot_dimension_numbers<[1], [0], [0], [1], [0, 0, 1, 1], [], []>} : vector<8x8xf32>, vector<8x128xf32>, vector<8x128xf32> -> vector<8x128xf32>
    %24 = vector.extract_strided_slice %6 {offsets = [0, 0], sizes = [8, 1], strides = [1, 1]} : vector<16x1xf32> to vector<8x1xf32>
    %25 = vector.broadcast %24 : vector<8x1xf32> to vector<8x128xf32>
    %26 = arith.addf %23, %25 : vector<8x128xf32>
    %cst_18 = arith.constant 0.000000e+00 : f32
    %27 = vector.broadcast %cst_18 : f32 to vector<8x128xf32>
    %28 = arith.maximumf %26, %27 : vector<8x128xf32>
    %29 = vector.extract_strided_slice %5 {offsets = [8, 0], sizes = [8, 8], strides = [1, 1]} : vector<16x8xf32> to vector<8x8xf32>
    %cst_19 = arith.constant dense<0.000000e+00> : vector<8x128xf32>
    %30 = tpu.matmul %29, %28, %cst_19 {dimension_numbers = #tpu.dot_dimension_numbers<[1], [0], [0], [1], [0, 0, 1, 1], [], []>} : vector<8x8xf32>, vector<8x128xf32>, vector<8x128xf32> -> vector<8x128xf32>
    %31 = vector.extract_strided_slice %6 {offsets = [8, 0], sizes = [8, 1], strides = [1, 1]} : vector<16x1xf32> to vector<8x1xf32>
    %32 = vector.broadcast %31 : vector<8x1xf32> to vector<8x128xf32>
    %33 = arith.addf %30, %32 : vector<8x128xf32>
    %cst_20 = arith.constant 0.353553385 : f32
    %34 = vector.broadcast %cst_20 : f32 to vector<8x128xf32>
    %35 = arith.mulf %33, %34 : vector<8x128xf32>
    %cst_21 = arith.constant dense<0xFF800000> : vector<8xf32>
    %36 = vector.multi_reduction <maximumf>, %35, %cst_21 [1] : vector<8x128xf32> to vector<8xf32>
    %37 = vector.shape_cast %36 : vector<8xf32> to vector<8x1xf32>
    %38 = vector.broadcast %37 : vector<8x1xf32> to vector<8x128xf32>
    %39 = arith.subf %35, %38 : vector<8x128xf32>
    %40 = math.exp %39 : vector<8x128xf32>
    %cst_22 = arith.constant dense<0.000000e+00> : vector<8x128xf32>
    %41 = tpu.matmul %40, %8, %cst_22 {dimension_numbers = #tpu.dot_dimension_numbers<[1], [0], [0], [1], [0, 0, 1, 1], [], []>} : vector<8x128xf32>, vector<128x128xf32>, vector<8x128xf32> -> vector<8x128xf32>
    %42 = tpu.reciprocal %41 {approx = true} : vector<8x128xf32> -> vector<8x128xf32>
    %43 = arith.mulf %40, %42 : vector<8x128xf32>
    %44 = tpu.concatenate %43, %43, %43 in 1 : vector<8x128xf32>, vector<8x128xf32>, vector<8x128xf32> -> vector<8x384xf32>
    %45 = arith.mulf %44, %12 : vector<8x384xf32>
    %cst_23 = arith.constant dense<0.000000e+00> : vector<8x48xf32>
    %46 = tpu.matmul %45, %7, %cst_23 {dimension_numbers = #tpu.dot_dimension_numbers<[1], [1], [0], [0], [0, 0, 1, 0], [], []>} : vector<8x384xf32>, vector<48x384xf32>, vector<8x48xf32> -> vector<8x48xf32>
    %c0_24 = arith.constant 0 : index
    %c0_25 = arith.constant 0 : index
    %c0_26 = arith.constant 0 : index
    %47 = vector.load %arg8[%c0_24, %c0_25, %c0_26] : memref<1x8x48xf32, #tpu.memory_space<vmem>>, vector<1x8x48xf32>
    %48 = vector.shape_cast %47 : vector<1x8x48xf32> to vector<8x48xf32>
    %49 = vector.shape_cast %46 : vector<8x48xf32> to vector<1x8x48xf32>
    tpu.vector_store %arg8[%c0_24, %c0_25, %c0_26], %49 {strides = array<i32>} : memref<1x8x48xf32, #tpu.memory_space<vmem>>, vector<1x8x48xf32>,
    return
  }
  func.func @transform_0(%arg0: i32) -> (i32, i32, i32) {
    %c0_i32 = arith.constant 0 : i32
    %c0_i32_0 = arith.constant 0 : i32
    %c0_i32_1 = arith.constant 0 : i32
    return %arg0, %c0_i32, %c0_i32_0 : i32, i32, i32
  }
  func.func @transform_1(%arg0: i32) -> (i32, i32, i32) {
    %c0_i32 = arith.constant 0 : i32
    %c0_i32_0 = arith.constant 0 : i32
    %c0_i32_1 = arith.constant 0 : i32
    return %arg0, %c0_i32, %c0_i32_0 : i32, i32, i32
  }
  func.func @transform_2(%arg0: i32) -> (i32, i32) {
    %c0_i32 = arith.constant 0 : i32
    %c0_i32_0 = arith.constant 0 : i32
    %c0_i32_1 = arith.constant 0 : i32
    return %c0_i32, %c0_i32_0 : i32, i32
  }
  func.func @transform_3(%arg0: i32) -> (i32, i32) {
    %c0_i32 = arith.constant 0 : i32
    %c0_i32_0 = arith.constant 0 : i32
    %c0_i32_1 = arith.constant 0 : i32
    return %c0_i32, %c0_i32_0 : i32, i32
  }
  func.func @transform_4(%arg0: i32) -> (i32, i32) {
    %c0_i32 = arith.constant 0 : i32
    %c0_i32_0 = arith.constant 0 : i32
    %c0_i32_1 = arith.constant 0 : i32
    return %c0_i32, %c0_i32_0 : i32, i32
  }
  func.func @transform_5(%arg0: i32) -> (i32, i32) {
    %c0_i32 = arith.constant 0 : i32
    %c0_i32_0 = arith.constant 0 : i32
    %c0_i32_1 = arith.constant 0 : i32
    return %c0_i32, %c0_i32_0 : i32, i32
  }
  func.func @transform_6(%arg0: i32) -> (i32, i32) {
    %c0_i32 = arith.constant 0 : i32
    %c0_i32_0 = arith.constant 0 : i32
    %c0_i32_1 = arith.constant 0 : i32
    return %c0_i32, %c0_i32_0 : i32, i32
  }
  func.func @transform_7(%arg0: i32) -> (i32, i32, i32) {
    %c0_i32 = arith.constant 0 : i32
    %c0_i32_0 = arith.constant 0 : i32
    %c0_i32_1 = arith.constant 0 : i32
    return %arg0, %c0_i32, %c0_i32_0 : i32, i32, i32
  }
}

</mosaic_0001>

<llo_original>
// kernel: tpu_custom_call.1
$region0: #{tpu_custom_call.1}
  #allocation0 [shape = 'u32[]', space=smem, size = 0x4, offset = 0x4, fixed_abs, tag = 'smem constant byte address 0x4 - core index']
  #allocation1 [shape = 'u32[144,128]{1,0:T(1,128)}', space=vmem, size = 0x12000, scoped, tag = 'internal scratch']
  %s0 = inlined_call_operand.vmem [shape: f32[2,4,384], index: 0, kind: input, shape index: {}]
  %s1 = inlined_call_operand.vmem [shape: f32[2,4,48], index: 1, kind: input, shape index: {}]
  %s2 = inlined_call_operand.vmem [shape: f32[24,4], index: 2, kind: input, shape index: {}]
  %s3 = inlined_call_operand.vmem [shape: f32[16,8], index: 3, kind: input, shape index: {}]
  %s4 = inlined_call_operand.vmem [shape: f32[16,1], index: 4, kind: input, shape index: {}]
  %s5 = inlined_call_operand.hbm [shape: f32[48,384], index: 5, kind: input, shape index: {}]
  %s6 = inlined_call_operand.hbm [shape: f32[128,128], index: 6, kind: input, shape index: {}]
  %s7 = inlined_call_operand.hbm [shape: f32[2,8,48], index: 7, kind: output, shape index: {}]
  %s8 = sld [smem:[#allocation0]]
  $region69: #{tpu_custom_call.1} parent=0
    _
  %s10 = ssub.s32 1, %s8
  %s11 = scalar_select 0, %s10, %s8
  $region1: #{tpu_custom_call.1} parent=0
    #allocation2 [shape = 'u8[73728]{0}', space=vmem, size = 0x12000, scoped, tag = 'input window, operand 5, single buffered']
    #allocation3 [shape = 's32[2]{0}', space=sflag, size = 0x8, scoped, tag = 'scoped memory for tpu_custom_call.1']
    #allocation4 [shape = 's32[2]{0}', space=sflag, size = 0x8, scoped, tag = 'scoped memory for tpu_custom_call.1']
    #allocation5 [shape = 'u8[65536]{0}', space=vmem, size = 0x10000, scoped, tag = 'input window, operand 6, single buffered']
    #allocation6 [shape = 's32[1]{0}', space=sflag, size = 0x4, scoped, tag = 'scoped memory for tpu_custom_call.1']
    #allocation7 [shape = 'u8[8192]{0}', space=vmem, size = 0x2000, scoped, tag = 'output window, operand 0']
    %12 = vsyncpa [#allocation3], 0
    %13 = vsyncpa [#allocation6], 0
    %14 = vsyncpa [#allocation4], 0
    %s15 = scalar_lea.sflag [#allocation4], 1
    %16 = vsyncpa %s15, 0
    loop: start=0, step=1, limit=4
    $region2: #{tpu_custom_call.1} parent=1 // loop_pre_header
      _
    $region3: #{tpu_custom_call.1} parent=1 // loop_header
      %s18 = sphi 0, %s22
      %p19 = scmp.ge.s32.totalorder %s18, 4
      %s28 = sphi 0, %s30
      %s31 = sphi 0, %s28
      %s32 = sphi 0, %s31
      %s48 = sphi 0, %s32
      %s54 = sphi 0, %s56
      %s57 = sphi 0, %s54
      %s58 = sphi 0, %s57
      %s74 = sphi 0, %s58
      %s78 = sphi 0, %s78
      %s80 = sphi 0, %s78
      %s81 = sphi 0, %s80
      %s95 = sphi 0, %s81
      %s99 = sphi 0, %s99
      %s101 = sphi 0, %s99
      %s102 = sphi 0, %s101
      %s116 = sphi 0, %s102
      %s120 = sphi 0, %s120
      %s122 = sphi 0, %s120
      %s123 = sphi 0, %s122
      %s137 = sphi 0, %s123
      %s141 = sphi 0, %s141
      %s143 = sphi 0, %s141
      %s144 = sphi 0, %s143
      %s158 = sphi 0, %s144
      %s162 = sphi 0, %s162
      %s164 = sphi 0, %s162
      %s165 = sphi 0, %s164
      %s179 = sphi 0, %s165
      %s185 = sphi 0, %s187
      %s188 = sphi 0, %s185
      %s189 = sphi 0, %s188
      %s205 = sphi 0, %s189
    $region4: #{tpu_custom_call.1} parent=1 // loop_header_branch
      %21 = sbr.rel (%p19) target = $region8
    $region5: #{tpu_custom_call.1} parent=1 // loop_body
      %s23 = ssub.s32 %s18, 1
      %s24 = ssub.s32 %s18, 2
      %s25 = sadd.s32 %s18, 1
      %s26 = ssub.s32 %s18, %s25
      %p27 = scmp.eq.s32.totalorder %s26, 0
      %s29 = sadd.s32 %s28, 1
      %s30 = scalar_select %p27, %s28, %s29
      %p33 = pneg %p27
      %p34 = scmp.eq.s32.totalorder %s18, 1
      %p35 = por %p33, %p34
      %p36 = scmp.ne.s32.totalorder %s28, %s31
      %p37 = scmp.eq.s32.totalorder %s18, 0
      %p38 = por %p36, %p37
      %p39 = scmp.ne.s32.totalorder %s28, %s31
      %p40 = scmp.eq.s32.totalorder %s23, 1
      %p41 = por %p39, %p40
      %p42 = scmp.ne.s32.totalorder %s31, %s32
      %p43 = scmp.eq.s32.totalorder %s23, 0
      %p44 = por %p42, %p43
      %p45 = scmp.ne.s32.totalorder %s31, %s32
      %p46 = scmp.eq.s32.totalorder %s24, 1
      %p47 = por %p45, %p46
      %p49 = scmp.ne.s32.totalorder %s32, %s48
      %p50 = scmp.eq.s32.totalorder %s24, 0
      %p51 = por %p49, %p50
      %s52 = ssub.s32 %s18, %s25
      %p53 = scmp.eq.s32.totalorder %s52, 0
      %s55 = sadd.s32 %s54, 1
      %s56 = scalar_select %p53, %s54, %s55
      %p59 = pneg %p53
      %p60 = scmp.eq.s32.totalorder %s18, 1
      %p61 = por %p59, %p60
      %p62 = scmp.ne.s32.totalorder %s54, %s57
      %p63 = scmp.eq.s32.totalorder %s18, 0
      %p64 = por %p62, %p63
      %p65 = scmp.ne.s32.totalorder %s54, %s57
      %p66 = scmp.eq.s32.totalorder %s23, 1
      %p67 = por %p65, %p66
      %p68 = scmp.ne.s32.totalorder %s57, %s58
      %p69 = scmp.eq.s32.totalorder %s23, 0
      %p70 = por %p68, %p69
      %p71 = scmp.ne.s32.totalorder %s57, %s58
      %p72 = scmp.eq.s32.totalorder %s24, 1
      %p73 = por %p71, %p72
      %p75 = scmp.ne.s32.totalorder %s58, %s74
      %p76 = scmp.eq.s32.totalorder %s24, 0
      %p77 = por %p75, %p76
      %s79 = sadd.s32 %s78, 1
      %p82 = scmp.eq.s32.totalorder %s18, 1
      %p83 = scmp.ne.s32.totalorder %s78, %s80
      %p84 = scmp.eq.s32.totalorder %s18, 0
      %p85 = por %p83, %p84
      %p86 = scmp.ne.s32.totalorder %s78, %s80
      %p87 = scmp.eq.s32.totalorder %s23, 1
      %p88 = por %p86, %p87
      %p89 = scmp.ne.s32.totalorder %s80, %s81
      %p90 = scmp.eq.s32.totalorder %s23, 0
      %p91 = por %p89, %p90
      %p92 = scmp.ne.s32.totalorder %s80, %s81
      %p93 = scmp.eq.s32.totalorder %s24, 1
      %p94 = por %p92, %p93
      %p96 = scmp.ne.s32.totalorder %s81, %s95
      %p97 = scmp.eq.s32.totalorder %s24, 0
      %p98 = por %p96, %p97
      %s100 = sadd.s32 %s99, 1
      %p103 = scmp.eq.s32.totalorder %s18, 1
      %p104 = scmp.ne.s32.totalorder %s99, %s101
      %p105 = scmp.eq.s32.totalorder %s18, 0
      %p106 = por %p104, %p105
      %p107 = scmp.ne.s32.totalorder %s99, %s101
      %p108 = scmp.eq.s32.totalorder %s23, 1
      %p109 = por %p107, %p108
      %p110 = scmp.ne.s32.totalorder %s101, %s102
      %p111 = scmp.eq.s32.totalorder %s23, 0
      %p112 = por %p110, %p111
      %p113 = scmp.ne.s32.totalorder %s101, %s102
      %p114 = scmp.eq.s32.totalorder %s24, 1
      %p115 = por %p113, %p114
      %p117 = scmp.ne.s32.totalorder %s102, %s116
      %p118 = scmp.eq.s32.totalorder %s24, 0
      %p119 = por %p117, %p118
      %s121 = sadd.s32 %s120, 1
      %p124 = scmp.eq.s32.totalorder %s18, 1
      %p125 = scmp.ne.s32.totalorder %s120, %s122
      %p126 = scmp.eq.s32.totalorder %s18, 0
      %p127 = por %p125, %p126
      %p128 = scmp.ne.s32.totalorder %s120, %s122
      %p129 = scmp.eq.s32.totalorder %s23, 1
      %p130 = por %p128, %p129
      %p131 = scmp.ne.s32.totalorder %s122, %s123
      %p132 = scmp.eq.s32.totalorder %s23, 0
      %p133 = por %p131, %p132
      %p134 = scmp.ne.s32.totalorder %s122, %s123
      %p135 = scmp.eq.s32.totalorder %s24, 1
      %p136 = por %p134, %p135
      %p138 = scmp.ne.s32.totalorder %s123, %s137
      %p139 = scmp.eq.s32.totalorder %s24, 0
      %p140 = por %p138, %p139
      %s142 = sadd.s32 %s141, 1
      %p145 = scmp.eq.s32.totalorder %s18, 1
      %p146 = scmp.ne.s32.totalorder %s141, %s143
      %p147 = scmp.eq.s32.totalorder %s18, 0
      %p148 = por %p146, %p147
      %p149 = scmp.ne.s32.totalorder %s141, %s143
      %p150 = scmp.eq.s32.totalorder %s23, 1
      %p151 = por %p149, %p150
      %p152 = scmp.ne.s32.totalorder %s143, %s144
      %p153 = scmp.eq.s32.totalorder %s23, 0
      %p154 = por %p152, %p153
      %p155 = scmp.ne.s32.totalorder %s143, %s144
      %p156 = scmp.eq.s32.totalorder %s24, 1
      %p157 = por %p155, %p156
      %p159 = scmp.ne.s32.totalorder %s144, %s158
      %p160 = scmp.eq.s32.totalorder %s24, 0
      %p161 = por %p159, %p160
      %s163 = sadd.s32 %s162, 1
      %p166 = scmp.eq.s32.totalorder %s18, 1
      %p167 = scmp.ne.s32.totalorder %s162, %s164
      %p168 = scmp.eq.s32.totalorder %s18, 0
      %p169 = por %p167, %p168
      %p170 = scmp.ne.s32.totalorder %s162, %s164
      %p171 = scmp.eq.s32.totalorder %s23, 1
      %p172 = por %p170, %p171
      %p173 = scmp.ne.s32.totalorder %s164, %s165
      %p174 = scmp.eq.s32.totalorder %s23, 0
      %p175 = por %p173, %p174
      %p176 = scmp.ne.s32.totalorder %s164, %s165
      %p177 = scmp.eq.s32.totalorder %s24, 1
      %p178 = por %p176, %p177
      %p180 = scmp.ne.s32.totalorder %s165, %s179
      %p181 = scmp.eq.s32.totalorder %s24, 0
      %p182 = por %p180, %p181
      %s183 = ssub.s32 %s18, %s25
      %p184 = scmp.eq.s32.totalorder %s183, 0
      %s186 = sadd.s32 %s185, 1
      %s187 = scalar_select %p184, %s185, %s186
      %p190 = pneg %p184
      %p191 = scmp.eq.s32.totalorder %s18, 1
      %p192 = por %p190, %p191
      %p193 = scmp.ne.s32.totalorder %s185, %s188
      %p194 = scmp.eq.s32.totalorder %s18, 0
      %p195 = por %p193, %p194
      %p196 = scmp.ne.s32.totalorder %s185, %s188
      %p197 = scmp.eq.s32.totalorder %s23, 1
      %p198 = por %p196, %p197
      %p199 = scmp.ne.s32.totalorder %s188, %s189
      %p200 = scmp.eq.s32.totalorder %s23, 0
      %p201 = por %p199, %p200
      %p202 = scmp.ne.s32.totalorder %s188, %s189
      %p203 = scmp.eq.s32.totalorder %s24, 1
      %p204 = por %p202, %p203
      %p206 = scmp.ne.s32.totalorder %s189, %s205
      %p207 = scmp.eq.s32.totalorder %s24, 0
      %p208 = por %p206, %p207
      %p209 = scmp.le.s32.totalorder 1, %s18
      %p210 = scmp.lt.s32.totalorder %s18, 3
      %p211 = pnand %p209, %p210
      %p212 = pneg %p211
      // Predicated region
      $region9: #{tpu_custom_call.1} parent=5 // pred_check
        _
      $region10: #{tpu_custom_call.1} parent=5 // pred_check_branch
        %214 = sbr.rel (%p211) target = $region12
      $region11: #{tpu_custom_call.1} parent=5 // pred_region
        %s215 = ssub.s32 %s18, 1
        // Predicated region
        $region13: #{tpu_custom_call.1} parent=11 // pred_check
          %p216 = pneg %p91
        $region14: #{tpu_custom_call.1} parent=11 // pred_check_branch
          %218 = sbr.rel (%p216) target = $region16
        $region15: #{tpu_custom_call.1} parent=11 // pred_region
          _
        $region16: #{tpu_custom_call.1} parent=11 // pred_fallthru
          _
        // Predicated region
        $region17: #{tpu_custom_call.1} parent=11 // pred_check
          %p219 = pneg %p112
        $region18: #{tpu_custom_call.1} parent=11 // pred_check_branch
          %221 = sbr.rel (%p219) target = $region20
        $region19: #{tpu_custom_call.1} parent=11 // pred_region
          _
        $region20: #{tpu_custom_call.1} parent=11 // pred_fallthru
          _
        // Predicated region
        $region21: #{tpu_custom_call.1} parent=11 // pred_check
          %p222 = pneg %p133
        $region22: #{tpu_custom_call.1} parent=11 // pred_check_branch
          %224 = sbr.rel (%p222) target = $region24
        $region23: #{tpu_custom_call.1} parent=11 // pred_region
          _
        $region24: #{tpu_custom_call.1} parent=11 // pred_fallthru
          _
        // Predicated region
        $region25: #{tpu_custom_call.1} parent=11 // pred_check
          %p225 = pneg %p154
        $region26: #{tpu_custom_call.1} parent=11 // pred_check_branch
          %227 = sbr.rel (%p225) target = $region28
        $region27: #{tpu_custom_call.1} parent=11 // pred_region
          %s229 = ssub.s32 2304, 2304
          %230 = vsyncadd [#allocation3], %s229
          %s231 = sshll.u32 [#allocation2], 4
          %s232 = int_to_ptr.vmem [resolvable:$true] %s231
          %237 = dma.hbm_to_vmem [thread:$0]  %s5, 2304, %s232, [#allocation3], 384, 384, 24
        $region28: #{tpu_custom_call.1} parent=11 // pred_fallthru
          _
        // Predicated region
        $region29: #{tpu_custom_call.1} parent=11 // pred_check
          %p238 = pneg %p175
        $region30: #{tpu_custom_call.1} parent=11 // pred_check_branch
          %240 = sbr.rel (%p238) target = $region32
        $region31: #{tpu_custom_call.1} parent=11 // pred_region
          %s242 = ssub.s32 2048, 2048
          %243 = vsyncadd [#allocation6], %s242
          %s244 = sshll.u32 [#allocation5], 4
          %s245 = int_to_ptr.vmem [resolvable:$true] %s244
          %250 = dma.hbm_to_vmem [thread:$0]  %s6, 2048, %s245, [#allocation6], 128, 128, 8
        $region32: #{tpu_custom_call.1} parent=11 // pred_fallthru
          _
      $region12: #{tpu_custom_call.1} parent=5 // pred_fallthru
        _
      %p251 = scmp.lt.s32.totalorder %s18, 2
      // Predicated region
      $region33: #{tpu_custom_call.1} parent=5 // pred_check
        %p252 = pneg %p251
      $region34: #{tpu_custom_call.1} parent=5 // pred_check_branch
        %254 = sbr.rel (%p252) target = $region36
      $region35: #{tpu_custom_call.1} parent=5 // pred_region
        // Predicated region
        $region37: #{tpu_custom_call.1} parent=35 // pred_check
          %p255 = pneg %p38
        $region38: #{tpu_custom_call.1} parent=35 // pred_check_branch
          %257 = sbr.rel (%p255) target = $region40
        $region39: #{tpu_custom_call.1} parent=35 // pred_region
          %p258 = scmp.lt.s32.totalorder %s18, 1
          %s259 = scalar_select %p258, %s18, 1
          %s260 = smul.addr %s259, 3
          %s261 = smul.addr %s260, 4
          %s262 = scalar_lea.vmem %s0, %s261
        $region40: #{tpu_custom_call.1} parent=35 // pred_fallthru
          _
        // Predicated region
        $region41: #{tpu_custom_call.1} parent=35 // pred_check
          %p263 = pneg %p64
        $region42: #{tpu_custom_call.1} parent=35 // pred_check_branch
          %265 = sbr.rel (%p263) target = $region44
        $region43: #{tpu_custom_call.1} parent=35 // pred_region
          %p266 = scmp.lt.s32.totalorder %s18, 1
          %s267 = scalar_select %p266, %s18, 1
          %s268 = smul.addr %s267, 4
          %s269 = scalar_lea.vmem %s1, %s268
        $region44: #{tpu_custom_call.1} parent=35 // pred_fallthru
          _
      $region36: #{tpu_custom_call.1} parent=5 // pred_fallthru
        _
      %p270 = scmp.le.s32.totalorder 1, %s18
      %p271 = scmp.lt.s32.totalorder %s18, 3
      %p272 = pnand %p270, %p271
      %p273 = pneg %p272
      // Predicated region
      $region45: #{tpu_custom_call.1} parent=5 // pred_check
        _
      $region46: #{tpu_custom_call.1} parent=5 // pred_check_branch
        %275 = sbr.rel (%p272) target = $region48
      $region47: #{tpu_custom_call.1} parent=5 // pred_region
        %s276 = ssub.s32 %s18, 1
        // Predicated region
        $region49: #{tpu_custom_call.1} parent=47 // pred_check
          %p277 = pneg %p154
        $region50: #{tpu_custom_call.1} parent=47 // pred_check_branch
          %279 = sbr.rel (%p277) target = $region52
        $region51: #{tpu_custom_call.1} parent=47 // pred_region
          %280 = dma.done [#allocation3], 2304
        $region52: #{tpu_custom_call.1} parent=47 // pred_fallthru
          _
        // Predicated region
        $region53: #{tpu_custom_call.1} parent=47 // pred_check
          %p281 = pneg %p175
        $region54: #{tpu_custom_call.1} parent=47 // pred_check_branch
          %283 = sbr.rel (%p281) target = $region56
        $region55: #{tpu_custom_call.1} parent=47 // pred_region
          %284 = dma.done [#allocation6], 2048
        $region56: #{tpu_custom_call.1} parent=47 // pred_fallthru
          _
        %p285 = scmp.lt.s32.totalorder %s23, 1
        %s286 = scalar_select %p285, %s23, 1
        %s287 = smul.addr %s286, 3
        %s288 = smul.addr %s287, 4
        %s289 = scalar_lea.vmem %s0, %s288
        %p290 = pneg %p44
        %p291 = pneg %p41
        %p292 = scmp.lt.s32.totalorder %s23, 1
        %s293 = scalar_select %p292, %s23, 1
        %s294 = smul.addr %s293, 4
        %s295 = scalar_lea.vmem %s1, %s294
        %p296 = pneg %p70
        %p297 = pneg %p67
        %p298 = pneg %p91
        %p299 = pneg %p88
        %p300 = pneg %p112
        %p301 = pneg %p109
        %p302 = pneg %p133
        %p303 = pneg %p130
        %p304 = pneg %p154
        %p305 = pneg %p151
        %p306 = pneg %p175
        %p307 = pneg %p172
        %p308 = pneg %p201
        %p309 = pneg %p198
        %s310 = sand.u32 %s188, 1
        %s311 = scalar_lea.sflag [#allocation4], %s310
        %s312 = sand.u32 %s188, 1
        %s313 = smul.addr %s312, 8
        %s314 = scalar_lea.vmem [#allocation7], %s313
        %p315 = scmp.lt.s32.totalorder %s23, 1
        %s316 = scalar_select %p315, %s23, 1
        %s317 = smul.addr %s316, 3
        %s318 = smul.addr %s317, 4
        %s319 = scalar_lea.vmem %s0, %s318
        %p320 = scmp.lt.s32.totalorder %s23, 1
        %s321 = scalar_select %p320, %s23, 1
        %s322 = smul.addr %s321, 4
        %s323 = scalar_lea.vmem %s1, %s322
        %v324 = vld [vmem:[%s319] sm:$0xff]
        %v325 = vld [vmem:[%s319 + $0x8] sm:$0xf]
        %v326 = vld [vmem:[%s323] sm:$0xf]
        %v327 = vld [vmem:[%s2] sm:$0xff]
        %v328 = vld [vmem:[%s2 + $0x8] sm:$0xff]
        %v329 = vld [vmem:[%s2 + $0x10] sm:$0xff]
        %v330 = vld [vmem:[%s3] sm:$0xff]
        %v331 = vld [vmem:[%s3 + $0x8] sm:$0xff]
        %v332 = vld [vmem:[%s4] sm:$0xff]
        %v333 = vld [vmem:[%s4 + $0x8] sm:$0xff]
        %v334 = vld [vmem:[#allocation2] sm:$0xff]
        %v335 = vld [vmem:[#allocation2 + $0x8] sm:$0xff]
        %v336 = vld [vmem:[#allocation2 + $0x10] sm:$0xff]
        %v337 = vld [vmem:[#allocation2 + $0x18] sm:$0xff]
        %v338 = vld [vmem:[#allocation2 + $0x20] sm:$0xff]
        %v339 = vld [vmem:[#allocation2 + $0x28] sm:$0xff]
        %v340 = vld [vmem:[#allocation2 + $0x30] sm:$0xff]
        %v341 = vld [vmem:[#allocation2 + $0x38] sm:$0xff]
        %v342 = vld [vmem:[#allocation2 + $0x40] sm:$0xff]
        %v343 = vld [vmem:[#allocation2 + $0x48] sm:$0xff]
        %v344 = vld [vmem:[#allocation2 + $0x50] sm:$0xff]
        %v345 = vld [vmem:[#allocation2 + $0x58] sm:$0xff]
        %v346 = vld [vmem:[#allocation2 + $0x60] sm:$0xff]
        %v347 = vld [vmem:[#allocation2 + $0x68] sm:$0xff]
        %v348 = vld [vmem:[#allocation2 + $0x70] sm:$0xff]
        %v349 = vld [vmem:[#allocation2 + $0x78] sm:$0xff]
        %v350 = vld [vmem:[#allocation2 + $0x80] sm:$0xff]
        %v351 = vld [vmem:[#allocation2 + $0x88] sm:$0xff]
        %v352 = vld [vmem:[#allocation5] sm:$0xff]
        %v353 = vld [vmem:[#allocation5 + $0x8] sm:$0xff]
        %v354 = vld [vmem:[#allocation5 + $0x10] sm:$0xff]
        %v355 = vld [vmem:[#allocation5 + $0x18] sm:$0xff]
        %v356 = vld [vmem:[#allocation5 + $0x20] sm:$0xff]
        %v357 = vld [vmem:[#allocation5 + $0x28] sm:$0xff]
        %v358 = vld [vmem:[#allocation5 + $0x30] sm:$0xff]
        %v359 = vld [vmem:[#allocation5 + $0x38] sm:$0xff]
        %v360 = vld [vmem:[#allocation5 + $0x40] sm:$0xff]
        %v361 = vld [vmem:[#allocation5 + $0x48] sm:$0xff]
        %v362 = vld [vmem:[#allocation5 + $0x50] sm:$0xff]
        %v363 = vld [vmem:[#allocation5 + $0x58] sm:$0xff]
        %v364 = vld [vmem:[#allocation5 + $0x60] sm:$0xff]
        %v365 = vld [vmem:[#allocation5 + $0x68] sm:$0xff]
        %v366 = vld [vmem:[#allocation5 + $0x70] sm:$0xff]
        %v367 = vld [vmem:[#allocation5 + $0x78] sm:$0xff]
        %v370 = vcombine.high %v324, %v324
        %vm371 = vcmask 31744
        %v373 = vsel %vm371, %v328, 0
        %v376 = vsel %vm371, %v329, 0
        %vm378 = vcmask 1043456
        %v379 = vsel %vm378, %v324, 0
        %v381 = vsel %vm378, %v370, 0
        %v383 = vsel %vm378, %v325, 0
        %385 = vmatprep.subr.mxu0 0.0
        %386 = vmatpush1.msra.mxu0 0.0
        %387 = vmatprep.subr.mxu0 0.0
        %388 = vmatpush1.msra.mxu0 0.0
        %389 = vmatprep.subr.mxu0 0.0
        %390 = vmatpush1.msra.mxu0 0.0
        %391 = vmatprep.subr.mxu0 0.0
        %392 = vmatpush1.msra.mxu0 0.0
        %393 = vmatprep.subr.mxu0 0.0
        %394 = vmatpush1.msra.mxu0 0.0
        %395 = vmatprep.subr.mxu0 0.0
        %396 = vmatpush1.msra.mxu0 0.0
        %397 = vmatprep.subr.mxu0 0.0
        %398 = vmatpush1.msra.mxu0 0.0
        %399 = vmatprep.subr.mxu0 0.0
        %400 = vmatpush1.msra.mxu0 0.0
        %401 = vmatprep.subr.mxu0 0.0
        %402 = vmatpush1.msra.mxu0 0.0
        %403 = vmatprep.subr.mxu0 0.0
        %404 = vmatpush1.msra.mxu0 0.0
        %405 = vmatprep.subr.mxu0 0.0
        %406 = vmatpush1.msra.mxu0 0.0
        %407 = vmatprep.subr.mxu0 0.0
        %408 = vmatpush1.msra.mxu0 0.0
        %409 = vmatprep.subr.mxu0 0.0
        %410 = vmatpush1.msra.mxu0 0.0
        %411 = vmatprep.subr.mxu0 0.0
        %412 = vmatpush1.msra.mxu0 0.0
        %413 = vmatprep.subr.mxu0 0.0
        %414 = vmatpush1.msra.mxu0 0.0
        %415 = vmatprep.subr.mxu0 %v381
        %416 = vmatpush1.msra.mxu0 %v379
        %417 = vmatprep.subr.mxu0 0.0
        %418 = vmatpush2.msra.mxu0 0.0
        %419 = vmatprep.subr.mxu0 0.0
        %420 = vmatpush2.msra.mxu0 0.0
        %421 = vmatprep.subr.mxu0 0.0
        %422 = vmatpush2.msra.mxu0 0.0
        %423 = vmatprep.subr.mxu0 0.0
        %424 = vmatpush2.msra.mxu0 0.0
        %425 = vmatprep.subr.mxu0 0.0
        %426 = vmatpush2.msra.mxu0 0.0
        %427 = vmatprep.subr.mxu0 0.0
        %428 = vmatpush2.msra.mxu0 0.0
        %429 = vmatprep.subr.mxu0 0.0
        %430 = vmatpush2.msra.mxu0 0.0
        %431 = vmatprep.subr.mxu0 0.0
        %432 = vmatpush2.msra.mxu0 0.0
        %433 = vmatprep.subr.mxu0 0.0
        %434 = vmatpush2.msra.mxu0 0.0
        %435 = vmatprep.subr.mxu0 0.0
        %436 = vmatpush2.msra.mxu0 0.0
        %437 = vmatprep.subr.mxu0 0.0
        %438 = vmatpush2.msra.mxu0 0.0
        %439 = vmatprep.subr.mxu0 0.0
        %440 = vmatpush2.msra.mxu0 0.0
        %441 = vmatprep.subr.mxu0 0.0
        %442 = vmatpush2.msra.mxu0 0.0
        %443 = vmatprep.subr.mxu0 0.0
        %444 = vmatpush2.msra.mxu0 0.0
        %445 = vmatprep.subr.mxu0 0.0
        %446 = vmatpush2.msra.mxu0 0.0
        %447 = vmatprep.subr.mxu0 0.0
        %448 = vmatpush2.msra.mxu0 0.0
        %449 = vmatprep.mubr.f32.mxu0 0.0
        %450 = vmatmul.mubr.f32.gmra.mxu0 %v373
        %v451 = vpop.f32.mrf.mxu0
        %v452 = vadd.f32 0.0, %v451
        %v453 = vpop.f32.mrf.mxu0
        %v454 = vadd.f32 0.0, %v453
        %455 = vmatprep.mubr.f32.mxu0 0.0
        %456 = vmatmul.mubr.f32.gmra.mxu0 %v376
        %v457 = vpop.f32.mrf.mxu0
        %v458 = vadd.f32 0.0, %v457
        %v459 = vpop.f32.mrf.mxu0
        %v460 = vadd.f32 0.0, %v459
        %461 = vdwg.mxu0
        %462 = vmatprep.subr.mxu0 0.0
        %463 = vmatpush1.msra.mxu0 0.0
        %464 = vmatprep.subr.mxu0 0.0
        %465 = vmatpush1.msra.mxu0 0.0
        %466 = vmatprep.subr.mxu0 0.0
        %467 = vmatpush1.msra.mxu0 0.0
        %468 = vmatprep.subr.mxu0 0.0
        %469 = vmatpush1.msra.mxu0 0.0
        %470 = vmatprep.subr.mxu0 0.0
        %471 = vmatpush1.msra.mxu0 0.0
        %472 = vmatprep.subr.mxu0 0.0
        %473 = vmatpush1.msra.mxu0 0.0
        %474 = vmatprep.subr.mxu0 0.0
        %475 = vmatpush1.msra.mxu0 0.0
        %476 = vmatprep.subr.mxu0 0.0
        %477 = vmatpush1.msra.mxu0 0.0
        %478 = vmatprep.subr.mxu0 0.0
        %479 = vmatpush1.msra.mxu0 0.0
        %480 = vmatprep.subr.mxu0 0.0
        %481 = vmatpush1.msra.mxu0 0.0
        %482 = vmatprep.subr.mxu0 0.0
        %483 = vmatpush1.msra.mxu0 0.0
        %484 = vmatprep.subr.mxu0 0.0
        %485 = vmatpush1.msra.mxu0 0.0
        %486 = vmatprep.subr.mxu0 0.0
        %487 = vmatpush1.msra.mxu0 0.0
        %488 = vmatprep.subr.mxu0 0.0
        %489 = vmatpush1.msra.mxu0 0.0
        %490 = vmatprep.subr.mxu0 0.0
        %491 = vmatpush1.msra.mxu0 0.0
        %492 = vmatprep.subr.mxu0 0.0
        %493 = vmatpush1.msra.mxu0 %v383
        %494 = vmatprep.subr.mxu0 0.0
        %495 = vmatpush2.msra.mxu0 0.0
        %496 = vmatprep.subr.mxu0 0.0
        %497 = vmatpush2.msra.mxu0 0.0
        %498 = vmatprep.subr.mxu0 0.0
        %499 = vmatpush2.msra.mxu0 0.0
        %500 = vmatprep.subr.mxu0 0.0
        %501 = vmatpush2.msra.mxu0 0.0
        %502 = vmatprep.subr.mxu0 0.0
        %503 = vmatpush2.msra.mxu0 0.0
        %504 = vmatprep.subr.mxu0 0.0
        %505 = vmatpush2.msra.mxu0 0.0
        %506 = vmatprep.subr.mxu0 0.0
        %507 = vmatpush2.msra.mxu0 0.0
        %508 = vmatprep.subr.mxu0 0.0
        %509 = vmatpush2.msra.mxu0 0.0
        %510 = vmatprep.subr.mxu0 0.0
        %511 = vmatpush2.msra.mxu0 0.0
        %512 = vmatprep.subr.mxu0 0.0
        %513 = vmatpush2.msra.mxu0 0.0
        %514 = vmatprep.subr.mxu0 0.0
        %515 = vmatpush2.msra.mxu0 0.0
        %516 = vmatprep.subr.mxu0 0.0
        %517 = vmatpush2.msra.mxu0 0.0
        %518 = vmatprep.subr.mxu0 0.0
        %519 = vmatpush2.msra.mxu0 0.0
        %520 = vmatprep.subr.mxu0 0.0
        %521 = vmatpush2.msra.mxu0 0.0
        %522 = vmatprep.subr.mxu0 0.0
        %523 = vmatpush2.msra.mxu0 0.0
        %524 = vmatprep.subr.mxu0 0.0
        %525 = vmatpush2.msra.mxu0 0.0
        %526 = vmatprep.mubr.f32.mxu0 0.0
        %527 = vmatmul.mubr.f32.gmra.mxu0 %v373
        %v528 = vpop.f32.mrf.mxu0
        %v529 = vadd.f32 0.0, %v528
        %v530 = vpop.f32.mrf.mxu0
        %531 = vmatprep.mubr.f32.mxu0 0.0
        %532 = vmatmul.mubr.f32.gmra.mxu0 %v376
        %v533 = vpop.f32.mrf.mxu0
        %v534 = vadd.f32 0.0, %v533
        %v535 = vpop.f32.mrf.mxu0
        %536 = vdwg.mxu0
        %v538 = vsel %vm371, %v327, 0
        %v541 = vsel %vm378, %v326, 0
        %543 = vmatprep.subr.mxu0 0.0
        %544 = vmatpush1.msra.mxu0 0.0
        %545 = vmatprep.subr.mxu0 0.0
        %546 = vmatpush1.msra.mxu0 0.0
        %547 = vmatprep.subr.mxu0 0.0
        %548 = vmatpush1.msra.mxu0 0.0
        %549 = vmatprep.subr.mxu0 0.0
        %550 = vmatpush1.msra.mxu0 0.0
        %551 = vmatprep.subr.mxu0 0.0
        %552 = vmatpush1.msra.mxu0 0.0
        %553 = vmatprep.subr.mxu0 0.0
        %554 = vmatpush1.msra.mxu0 0.0
        %555 = vmatprep.subr.mxu0 0.0
        %556 = vmatpush1.msra.mxu0 0.0
        %557 = vmatprep.subr.mxu0 0.0
        %558 = vmatpush1.msra.mxu0 0.0
        %559 = vmatprep.subr.mxu0 0.0
        %560 = vmatpush1.msra.mxu0 0.0
        %561 = vmatprep.subr.mxu0 0.0
        %562 = vmatpush1.msra.mxu0 0.0
        %563 = vmatprep.subr.mxu0 0.0
        %564 = vmatpush1.msra.mxu0 0.0
        %565 = vmatprep.subr.mxu0 0.0
        %566 = vmatpush1.msra.mxu0 0.0
        %567 = vmatprep.subr.mxu0 0.0
        %568 = vmatpush1.msra.mxu0 0.0
        %569 = vmatprep.subr.mxu0 0.0
        %570 = vmatpush1.msra.mxu0 0.0
        %571 = vmatprep.subr.mxu0 0.0
        %572 = vmatpush1.msra.mxu0 0.0
        %573 = vmatprep.subr.mxu0 0.0
        %574 = vmatpush1.msra.mxu0 %v541
        %575 = vmatprep.subr.mxu0 0.0
        %576 = vmatpush2.msra.mxu0 0.0
        %577 = vmatprep.subr.mxu0 0.0
        %578 = vmatpush2.msra.mxu0 0.0
        %579 = vmatprep.subr.mxu0 0.0
        %580 = vmatpush2.msra.mxu0 0.0
        %581 = vmatprep.subr.mxu0 0.0
        %582 = vmatpush2.msra.mxu0 0.0
        %583 = vmatprep.subr.mxu0 0.0
        %584 = vmatpush2.msra.mxu0 0.0
        %585 = vmatprep.subr.mxu0 0.0
        %586 = vmatpush2.msra.mxu0 0.0
        %587 = vmatprep.subr.mxu0 0.0
        %588 = vmatpush2.msra.mxu0 0.0
        %589 = vmatprep.subr.mxu0 0.0
        %590 = vmatpush2.msra.mxu0 0.0
        %591 = vmatprep.subr.mxu0 0.0
        %592 = vmatpush2.msra.mxu0 0.0
        %593 = vmatprep.subr.mxu0 0.0
        %594 = vmatpush2.msra.mxu0 0.0
        %595 = vmatprep.subr.mxu0 0.0
        %596 = vmatpush2.msra.mxu0 0.0
        %597 = vmatprep.subr.mxu0 0.0
        %598 = vmatpush2.msra.mxu0 0.0
        %599 = vmatprep.subr.mxu0 0.0
        %600 = vmatpush2.msra.mxu0 0.0
        %601 = vmatprep.subr.mxu0 0.0
        %602 = vmatpush2.msra.mxu0 0.0
        %603 = vmatprep.subr.mxu0 0.0
        %604 = vmatpush2.msra.mxu0 0.0
        %605 = vmatprep.subr.mxu0 0.0
        %606 = vmatpush2.msra.mxu0 0.0
        %607 = vmatprep.mubr.f32.mxu0 0.0
        %608 = vmatmul.mubr.f32.gmra.mxu0 %v538
        %v609 = vpop.f32.mrf.mxu0
        %v610 = vadd.f32 0.0, %v609
        %v611 = vpop.f32.mrf.mxu0
        %612 = vdwg.mxu0
        %vm613 = vcmask 392192
        %v615 = vsel %vm613, %v610, 0
        %617 = vmatprep.subr.mxu0 0.0
        %618 = vmatpush1.msra.mxu0 0.0
        %619 = vmatprep.subr.mxu0 0.0
        %620 = vmatpush1.msra.mxu0 0.0
        %621 = vmatprep.subr.mxu0 0.0
        %622 = vmatpush1.msra.mxu0 0.0
        %623 = vmatprep.subr.mxu0 0.0
        %624 = vmatpush1.msra.mxu0 0.0
        %625 = vmatprep.subr.mxu0 0.0
        %626 = vmatpush1.msra.mxu0 0.0
        %627 = vmatprep.subr.mxu0 0.0
        %628 = vmatpush1.msra.mxu0 0.0
        %629 = vmatprep.subr.mxu0 0.0
        %630 = vmatpush1.msra.mxu0 0.0
        %631 = vmatprep.subr.mxu0 0.0
        %632 = vmatpush1.msra.mxu0 0.0
        %633 = vmatprep.subr.mxu0 0.0
        %634 = vmatpush1.msra.mxu0 0.0
        %635 = vmatprep.subr.mxu0 0.0
        %636 = vmatpush1.msra.mxu0 0.0
        %637 = vmatprep.subr.mxu0 %v350
        %638 = vmatpush1.msra.mxu0 %v349
        %639 = vmatprep.subr.mxu0 %v347
        %640 = vmatpush1.msra.mxu0 %v346
        %641 = vmatprep.subr.mxu0 %v344
        %642 = vmatpush1.msra.mxu0 %v343
        %643 = vmatprep.subr.mxu0 %v341
        %644 = vmatpush1.msra.mxu0 %v340
        %645 = vmatprep.subr.mxu0 %v338
        %646 = vmatpush1.msra.mxu0 %v337
        %647 = vmatprep.subr.mxu0 %v335
        %648 = vmatpush1.msra.mxu0 %v334
        %649 = vmatprep.subr.mxu0 0.0
        %650 = vmatpush2.msra.mxu0 0.0
        %651 = vmatprep.subr.mxu0 0.0
        %652 = vmatpush2.msra.mxu0 0.0
        %653 = vmatprep.subr.mxu0 0.0
        %654 = vmatpush2.msra.mxu0 0.0
        %655 = vmatprep.subr.mxu0 0.0
        %656 = vmatpush2.msra.mxu0 0.0
        %657 = vmatprep.subr.mxu0 0.0
        %658 = vmatpush2.msra.mxu0 0.0
        %659 = vmatprep.subr.mxu0 0.0
        %660 = vmatpush2.msra.mxu0 0.0
        %661 = vmatprep.subr.mxu0 0.0
        %662 = vmatpush2.msra.mxu0 0.0
        %663 = vmatprep.subr.mxu0 0.0
        %664 = vmatpush2.msra.mxu0 0.0
        %665 = vmatprep.subr.mxu0 0.0
        %666 = vmatpush2.msra.mxu0 0.0
        %667 = vmatprep.subr.mxu0 0.0
        %668 = vmatpush2.msra.mxu0 0.0
        %669 = vmatprep.subr.mxu0 0.0
        %670 = vmatpush2.msra.mxu0 0.0
        %671 = vmatprep.subr.mxu0 0.0
        %672 = vmatpush2.msra.mxu0 0.0
        %673 = vmatprep.subr.mxu0 0.0
        %674 = vmatpush2.msra.mxu0 0.0
        %675 = vmatprep.subr.mxu0 0.0
        %676 = vmatpush2.msra.mxu0 0.0
        %677 = vmatprep.subr.mxu0 0.0
        %678 = vmatpush2.msra.mxu0 0.0
        %679 = vmatprep.subr.mxu0 0.0
        %680 = vmatpush2.msra.mxu0 0.0
        %681 = vmatprep.mubr.f32.mxu0 0.0
        %682 = vmatmul.mubr.f32.gmra.mxu0 %v615
        %v683 = vpop.f32.mrf.mxu0
        %v684 = vadd.f32 0.0, %v683
        %v685 = vpop.f32.mrf.mxu0
        %v686 = vadd.f32 0.0, %v685
        %687 = vdwg.mxu0
        %688 = vmatprep.subr.mxu0 0.0
        %689 = vmatpush1.msra.mxu0 0.0
        %690 = vmatprep.subr.mxu0 0.0
        %691 = vmatpush1.msra.mxu0 0.0
        %692 = vmatprep.subr.mxu0 0.0
        %693 = vmatpush1.msra.mxu0 0.0
        %694 = vmatprep.subr.mxu0 0.0
        %695 = vmatpush1.msra.mxu0 0.0
        %696 = vmatprep.subr.mxu0 0.0
        %697 = vmatpush1.msra.mxu0 0.0
        %698 = vmatprep.subr.mxu0 0.0
        %699 = vmatpush1.msra.mxu0 0.0
        %700 = vmatprep.subr.mxu0 0.0
        %701 = vmatpush1.msra.mxu0 0.0
        %702 = vmatprep.subr.mxu0 0.0
        %703 = vmatpush1.msra.mxu0 0.0
        %704 = vmatprep.subr.mxu0 0.0
        %705 = vmatpush1.msra.mxu0 0.0
        %706 = vmatprep.subr.mxu0 0.0
        %707 = vmatpush1.msra.mxu0 0.0
        %708 = vmatprep.subr.mxu0 0.0
        %709 = vmatpush1.msra.mxu0 %v351
        %710 = vmatprep.subr.mxu0 0.0
        %711 = vmatpush1.msra.mxu0 %v348
        %712 = vmatprep.subr.mxu0 0.0
        %713 = vmatpush1.msra.mxu0 %v345
        %714 = vmatprep.subr.mxu0 0.0
        %715 = vmatpush1.msra.mxu0 %v342
        %716 = vmatprep.subr.mxu0 0.0
        %717 = vmatpush1.msra.mxu0 %v339
        %718 = vmatprep.subr.mxu0 0.0
        %719 = vmatpush1.msra.mxu0 %v336
        %720 = vmatprep.subr.mxu0 0.0
        %721 = vmatpush2.msra.mxu0 0.0
        %722 = vmatprep.subr.mxu0 0.0
        %723 = vmatpush2.msra.mxu0 0.0
        %724 = vmatprep.subr.mxu0 0.0
        %725 = vmatpush2.msra.mxu0 0.0
        %726 = vmatprep.subr.mxu0 0.0
        %727 = vmatpush2.msra.mxu0 0.0
        %728 = vmatprep.subr.mxu0 0.0
        %729 = vmatpush2.msra.mxu0 0.0
        %730 = vmatprep.subr.mxu0 0.0
        %731 = vmatpush2.msra.mxu0 0.0
        %732 = vmatprep.subr.mxu0 0.0
        %733 = vmatpush2.msra.mxu0 0.0
        %734 = vmatprep.subr.mxu0 0.0
        %735 = vmatpush2.msra.mxu0 0.0
        %736 = vmatprep.subr.mxu0 0.0
        %737 = vmatpush2.msra.mxu0 0.0
        %738 = vmatprep.subr.mxu0 0.0
        %739 = vmatpush2.msra.mxu0 0.0
        %740 = vmatprep.subr.mxu0 0.0
        %741 = vmatpush2.msra.mxu0 0.0
        %742 = vmatprep.subr.mxu0 0.0
        %743 = vmatpush2.msra.mxu0 0.0
        %744 = vmatprep.subr.mxu0 0.0
        %745 = vmatpush2.msra.mxu0 0.0
        %746 = vmatprep.subr.mxu0 0.0
        %747 = vmatpush2.msra.mxu0 0.0
        %748 = vmatprep.subr.mxu0 0.0
        %749 = vmatpush2.msra.mxu0 0.0
        %750 = vmatprep.subr.mxu0 0.0
        %751 = vmatpush2.msra.mxu0 0.0
        %752 = vmatprep.mubr.f32.mxu0 0.0
        %753 = vmatmul.mubr.f32.gmra.mxu0 %v615
        %v754 = vpop.f32.mrf.mxu0
        %v755 = vadd.f32 0.0, %v754
        %v756 = vpop.f32.mrf.mxu0
        %757 = vdwg.mxu0
        %v758 = vmul.f32 %v684, %v452
        %v759 = vmul.f32 %v686, %v454
        %v760 = vmul.f32 %v755, %v529
        %v761 = vadd.f32 %v758, %v759
        %v762 = vadd.f32 %v761, %v760
        %764 = vset.pattern.permute.xlu0 0
        %765 = vperm.xlu0 %764, %v332
        %v766 = vpop.permute.xlu0 %765
        %vm768 = vcmask 64512
        %v770 = vsel %vm768, %v330, 0
        %772 = vmatprep.subr.mxu0 0.0
        %773 = vmatpush1.msra.mxu0 0.0
        %774 = vmatprep.subr.mxu0 0.0
        %775 = vmatpush1.msra.mxu0 0.0
        %776 = vmatprep.subr.mxu0 0.0
        %777 = vmatpush1.msra.mxu0 0.0
        %778 = vmatprep.subr.mxu0 0.0
        %779 = vmatpush1.msra.mxu0 0.0
        %780 = vmatprep.subr.mxu0 0.0
        %781 = vmatpush1.msra.mxu0 0.0
        %782 = vmatprep.subr.mxu0 0.0
        %783 = vmatpush1.msra.mxu0 0.0
        %784 = vmatprep.subr.mxu0 0.0
        %785 = vmatpush1.msra.mxu0 0.0
        %786 = vmatprep.subr.mxu0 0.0
        %787 = vmatpush1.msra.mxu0 0.0
        %788 = vmatprep.subr.mxu0 0.0
        %789 = vmatpush1.msra.mxu0 0.0
        %790 = vmatprep.subr.mxu0 0.0
        %791 = vmatpush1.msra.mxu0 0.0
        %792 = vmatprep.subr.mxu0 0.0
        %793 = vmatpush1.msra.mxu0 0.0
        %794 = vmatprep.subr.mxu0 0.0
        %795 = vmatpush1.msra.mxu0 0.0
        %796 = vmatprep.subr.mxu0 0.0
        %797 = vmatpush1.msra.mxu0 0.0
        %798 = vmatprep.subr.mxu0 0.0
        %799 = vmatpush1.msra.mxu0 0.0
        %800 = vmatprep.subr.mxu0 0.0
        %801 = vmatpush1.msra.mxu0 0.0
        %802 = vmatprep.subr.mxu0 0.0
        %803 = vmatpush1.msra.mxu0 %v762
        %804 = vmatprep.subr.mxu0 0.0
        %805 = vmatpush2.msra.mxu0 0.0
        %806 = vmatprep.subr.mxu0 0.0
        %807 = vmatpush2.msra.mxu0 0.0
        %808 = vmatprep.subr.mxu0 0.0
        %809 = vmatpush2.msra.mxu0 0.0
        %810 = vmatprep.subr.mxu0 0.0
        %811 = vmatpush2.msra.mxu0 0.0
        %812 = vmatprep.subr.mxu0 0.0
        %813 = vmatpush2.msra.mxu0 0.0
        %814 = vmatprep.subr.mxu0 0.0
        %815 = vmatpush2.msra.mxu0 0.0
        %816 = vmatprep.subr.mxu0 0.0
        %817 = vmatpush2.msra.mxu0 0.0
        %818 = vmatprep.subr.mxu0 0.0
        %819 = vmatpush2.msra.mxu0 0.0
        %820 = vmatprep.subr.mxu0 0.0
        %821 = vmatpush2.msra.mxu0 0.0
        %822 = vmatprep.subr.mxu0 0.0
        %823 = vmatpush2.msra.mxu0 0.0
        %824 = vmatprep.subr.mxu0 0.0
        %825 = vmatpush2.msra.mxu0 0.0
        %826 = vmatprep.subr.mxu0 0.0
        %827 = vmatpush2.msra.mxu0 0.0
        %828 = vmatprep.subr.mxu0 0.0
        %829 = vmatpush2.msra.mxu0 0.0
        %830 = vmatprep.subr.mxu0 0.0
        %831 = vmatpush2.msra.mxu0 0.0
        %832 = vmatprep.subr.mxu0 0.0
        %833 = vmatpush2.msra.mxu0 0.0
        %834 = vmatprep.subr.mxu0 0.0
        %835 = vmatpush2.msra.mxu0 0.0
        %836 = vmatprep.mubr.f32.mxu0 0.0
        %837 = vmatmul.mubr.f32.gmra.mxu0 %v770
        %v838 = vpop.f32.mrf.mxu0
        %v839 = vadd.f32 %v766, %v838
        %v840 = vpop.f32.mrf.mxu0
        %841 = vdwg.mxu0
        %v842 = vmax.f32 %v839, 0.0
        %844 = vset.pattern.permute.xlu0 0
        %845 = vperm.xlu0 %844, %v333
        %v846 = vpop.permute.xlu0 %845
        %v849 = vsel %vm768, %v331, 0
        %851 = vmatprep.subr.mxu0 0.0
        %852 = vmatpush1.msra.mxu0 0.0
        %853 = vmatprep.subr.mxu0 0.0
        %854 = vmatpush1.msra.mxu0 0.0
        %855 = vmatprep.subr.mxu0 0.0
        %856 = vmatpush1.msra.mxu0 0.0
        %857 = vmatprep.subr.mxu0 0.0
        %858 = vmatpush1.msra.mxu0 0.0
        %859 = vmatprep.subr.mxu0 0.0
        %860 = vmatpush1.msra.mxu0 0.0
        %861 = vmatprep.subr.mxu0 0.0
        %862 = vmatpush1.msra.mxu0 0.0
        %863 = vmatprep.subr.mxu0 0.0
        %864 = vmatpush1.msra.mxu0 0.0
        %865 = vmatprep.subr.mxu0 0.0
        %866 = vmatpush1.msra.mxu0 0.0
        %867 = vmatprep.subr.mxu0 0.0
        %868 = vmatpush1.msra.mxu0 0.0
        %869 = vmatprep.subr.mxu0 0.0
        %870 = vmatpush1.msra.mxu0 0.0
        %871 = vmatprep.subr.mxu0 0.0
        %872 = vmatpush1.msra.mxu0 0.0
        %873 = vmatprep.subr.mxu0 0.0
        %874 = vmatpush1.msra.mxu0 0.0
        %875 = vmatprep.subr.mxu0 0.0
        %876 = vmatpush1.msra.mxu0 0.0
        %877 = vmatprep.subr.mxu0 0.0
        %878 = vmatpush1.msra.mxu0 0.0
        %879 = vmatprep.subr.mxu0 0.0
        %880 = vmatpush1.msra.mxu0 0.0
        %881 = vmatprep.subr.mxu0 0.0
        %882 = vmatpush1.msra.mxu0 %v842
        %883 = vmatprep.subr.mxu0 0.0
        %884 = vmatpush2.msra.mxu0 0.0
        %885 = vmatprep.subr.mxu0 0.0
        %886 = vmatpush2.msra.mxu0 0.0
        %887 = vmatprep.subr.mxu0 0.0
        %888 = vmatpush2.msra.mxu0 0.0
        %889 = vmatprep.subr.mxu0 0.0
        %890 = vmatpush2.msra.mxu0 0.0
        %891 = vmatprep.subr.mxu0 0.0
        %892 = vmatpush2.msra.mxu0 0.0
        %893 = vmatprep.subr.mxu0 0.0
        %894 = vmatpush2.msra.mxu0 0.0
        %895 = vmatprep.subr.mxu0 0.0
        %896 = vmatpush2.msra.mxu0 0.0
        %897 = vmatprep.subr.mxu0 0.0
        %898 = vmatpush2.msra.mxu0 0.0
        %899 = vmatprep.subr.mxu0 0.0
        %900 = vmatpush2.msra.mxu0 0.0
        %901 = vmatprep.subr.mxu0 0.0
        %902 = vmatpush2.msra.mxu0 0.0
        %903 = vmatprep.subr.mxu0 0.0
        %904 = vmatpush2.msra.mxu0 0.0
        %905 = vmatprep.subr.mxu0 0.0
        %906 = vmatpush2.msra.mxu0 0.0
        %907 = vmatprep.subr.mxu0 0.0
        %908 = vmatpush2.msra.mxu0 0.0
        %909 = vmatprep.subr.mxu0 0.0
        %910 = vmatpush2.msra.mxu0 0.0
        %911 = vmatprep.subr.mxu0 0.0
        %912 = vmatpush2.msra.mxu0 0.0
        %913 = vmatprep.subr.mxu0 0.0
        %914 = vmatpush2.msra.mxu0 0.0
        %915 = vmatprep.mubr.f32.mxu0 0.0
        %916 = vmatmul.mubr.f32.gmra.mxu0 %v849
        %v917 = vpop.f32.mrf.mxu0
        %v918 = vadd.f32 %v846, %v917
        %v919 = vpop.f32.mrf.mxu0
        %920 = vdwg.mxu0
        %v921 = vmul.f32 %v918, 0.35355338
        %922 = vmax.xlane.f32.xlu0 %v921
        %v923 = vpop.xlane.xlu0 %922
        %v924 = vsub.f32 %v921, %v923
        %v925 = vmul.f32 %v924, 1.442695
        %v926 = vpow.pop %v925
        %927 = vmatprep.subr.mxu0 0.0
        %928 = vmatpush1.msra.mxu0 %v367
        %929 = vmatprep.subr.mxu0 0.0
        %930 = vmatpush1.msra.mxu0 %v366
        %931 = vmatprep.subr.mxu0 0.0
        %932 = vmatpush1.msra.mxu0 %v365
        %933 = vmatprep.subr.mxu0 0.0
        %934 = vmatpush1.msra.mxu0 %v364
        %935 = vmatprep.subr.mxu0 0.0
        %936 = vmatpush1.msra.mxu0 %v363
        %937 = vmatprep.subr.mxu0 0.0
        %938 = vmatpush1.msra.mxu0 %v362
        %939 = vmatprep.subr.mxu0 0.0
        %940 = vmatpush1.msra.mxu0 %v361
        %941 = vmatprep.subr.mxu0 0.0
        %942 = vmatpush1.msra.mxu0 %v360
        %943 = vmatprep.subr.mxu0 0.0
        %944 = vmatpush1.msra.mxu0 %v359
        %945 = vmatprep.subr.mxu0 0.0
        %946 = vmatpush1.msra.mxu0 %v358
        %947 = vmatprep.subr.mxu0 0.0
        %948 = vmatpush1.msra.mxu0 %v357
        %949 = vmatprep.subr.mxu0 0.0
        %950 = vmatpush1.msra.mxu0 %v356
        %951 = vmatprep.subr.mxu0 0.0
        %952 = vmatpush1.msra.mxu0 %v355
        %953 = vmatprep.subr.mxu0 0.0
        %954 = vmatpush1.msra.mxu0 %v354
        %955 = vmatprep.subr.mxu0 0.0
        %956 = vmatpush1.msra.mxu0 %v353
        %957 = vmatprep.subr.mxu0 0.0
        %958 = vmatpush1.msra.mxu0 %v352
        %959 = vmatprep.subr.mxu0 0.0
        %960 = vmatpush2.msra.mxu0 0.0
        %961 = vmatprep.subr.mxu0 0.0
        %962 = vmatpush2.msra.mxu0 0.0
        %963 = vmatprep.subr.mxu0 0.0
        %964 = vmatpush2.msra.mxu0 0.0
        %965 = vmatprep.subr.mxu0 0.0
        %966 = vmatpush2.msra.mxu0 0.0
        %967 = vmatprep.subr.mxu0 0.0
        %968 = vmatpush2.msra.mxu0 0.0
        %969 = vmatprep.subr.mxu0 0.0
        %970 = vmatpush2.msra.mxu0 0.0
        %971 = vmatprep.subr.mxu0 0.0
        %972 = vmatpush2.msra.mxu0 0.0
        %973 = vmatprep.subr.mxu0 0.0
        %974 = vmatpush2.msra.mxu0 0.0
        %975 = vmatprep.subr.mxu0 0.0
        %976 = vmatpush2.msra.mxu0 0.0
        %977 = vmatprep.subr.mxu0 0.0
        %978 = vmatpush2.msra.mxu0 0.0
        %979 = vmatprep.subr.mxu0 0.0
        %980 = vmatpush2.msra.mxu0 0.0
        %981 = vmatprep.subr.mxu0 0.0
        %982 = vmatpush2.msra.mxu0 0.0
        %983 = vmatprep.subr.mxu0 0.0
        %984 = vmatpush2.msra.mxu0 0.0
        %985 = vmatprep.subr.mxu0 0.0
        %986 = vmatpush2.msra.mxu0 0.0
        %987 = vmatprep.subr.mxu0 0.0
        %988 = vmatpush2.msra.mxu0 0.0
        %989 = vmatprep.subr.mxu0 0.0
        %990 = vmatpush2.msra.mxu0 0.0
        %991 = vmatprep.mubr.f32.mxu0 0.0
        %992 = vmatmul.mubr.f32.gmra.mxu0 %v926
        %v993 = vpop.f32.mrf.mxu0
        %v994 = vadd.f32 0.0, %v993
        %v995 = vpop.f32.mrf.mxu0
        %996 = vdwg.mxu0
        %v997 = vrcp.pop %v994
        %v998 = vmul.f32 %v926, %v997
        %v999 = vmul.f32 %v998, %v458
        %v1000 = vmul.f32 %v998, %v460
        %v1001 = vmul.f32 %v998, %v534
        %1002 = vmatprep.subr.mxu0 0.0
        %1003 = vmatpush1.xpose.msra.mxu0 0.0
        %1004 = vmatprep.subr.mxu0 0.0
        %1005 = vmatpush1.xpose.msra.mxu0 0.0
        %1006 = vmatprep.subr.mxu0 0.0
        %1007 = vmatpush1.xpose.msra.mxu0 0.0
        %1008 = vmatprep.subr.mxu0 0.0
        %1009 = vmatpush1.xpose.msra.mxu0 0.0
        %1010 = vmatprep.subr.mxu0 0.0
        %1011 = vmatpush1.xpose.msra.mxu0 0.0
        %1012 = vmatprep.subr.mxu0 0.0
        %1013 = vmatpush1.xpose.msra.mxu0 0.0
        %1014 = vmatprep.subr.mxu0 0.0
        %1015 = vmatpush1.xpose.msra.mxu0 0.0
        %1016 = vmatprep.subr.mxu0 0.0
        %1017 = vmatpush1.xpose.msra.mxu0 0.0
        %1018 = vmatprep.subr.mxu0 0.0
        %1019 = vmatpush1.xpose.msra.mxu0 0.0
        %1020 = vmatprep.subr.mxu0 0.0
        %1021 = vmatpush1.xpose.msra.mxu0 0.0
        %1022 = vmatprep.subr.mxu0 %v350
        %1023 = vmatpush1.xpose.msra.mxu0 %v349
        %1024 = vmatprep.subr.mxu0 %v347
        %1025 = vmatpush1.xpose.msra.mxu0 %v346
        %1026 = vmatprep.subr.mxu0 %v344
        %1027 = vmatpush1.xpose.msra.mxu0 %v343
        %1028 = vmatprep.subr.mxu0 %v341
        %1029 = vmatpush1.xpose.msra.mxu0 %v340
        %1030 = vmatprep.subr.mxu0 %v338
        %1031 = vmatpush1.xpose.msra.mxu0 %v337
        %1032 = vmatprep.subr.mxu0 %v335
        %1033 = vmatpush1.xpose.msra.mxu0 %v334
        %1034 = vmatprep.subr.mxu0 0.0
        %1035 = vmatpush2.xpose.msra.mxu0 0.0
        %1036 = vmatprep.subr.mxu0 0.0
        %1037 = vmatpush2.xpose.msra.mxu0 0.0
        %1038 = vmatprep.subr.mxu0 0.0
        %1039 = vmatpush2.xpose.msra.mxu0 0.0
        %1040 = vmatprep.subr.mxu0 0.0
        %1041 = vmatpush2.xpose.msra.mxu0 0.0
        %1042 = vmatprep.subr.mxu0 0.0
        %1043 = vmatpush2.xpose.msra.mxu0 0.0
        %1044 = vmatprep.subr.mxu0 0.0
        %1045 = vmatpush2.xpose.msra.mxu0 0.0
        %1046 = vmatprep.subr.mxu0 0.0
        %1047 = vmatpush2.xpose.msra.mxu0 0.0
        %1048 = vmatprep.subr.mxu0 0.0
        %1049 = vmatpush2.xpose.msra.mxu0 0.0
        %1050 = vmatprep.subr.mxu0 0.0
        %1051 = vmatpush2.xpose.msra.mxu0 0.0
        %1052 = vmatprep.subr.mxu0 0.0
        %1053 = vmatpush2.xpose.msra.mxu0 0.0
        %1054 = vmatprep.subr.mxu0 0.0
        %1055 = vmatpush2.xpose.msra.mxu0 0.0
        %1056 = vmatprep.subr.mxu0 0.0
        %1057 = vmatpush2.xpose.msra.mxu0 0.0
        %1058 = vmatprep.subr.mxu0 0.0
        %1059 = vmatpush2.xpose.msra.mxu0 0.0
        %1060 = vmatprep.subr.mxu0 0.0
        %1061 = vmatpush2.xpose.msra.mxu0 0.0
        %1062 = vmatprep.subr.mxu0 0.0
        %1063 = vmatpush2.xpose.msra.mxu0 0.0
        %1064 = vmatprep.subr.mxu0 0.0
        %1065 = vmatpush2.xpose.msra.mxu0 0.0
        %1066 = vmatprep.mubr.f32.mxu0 %v1000
        %1067 = vmatmul.mubr.f32.gmra.mxu0 %v999
        %v1068 = vpop.f32.mrf.mxu0
        %v1069 = vadd.f32 0.0, %v1068
        %v1070 = vpop.f32.mrf.mxu0
        %1071 = vdwg.mxu0
        %1072 = vmatprep.subr.mxu0 0.0
        %1073 = vmatpush1.xpose.msra.mxu0 0.0
        %1074 = vmatprep.subr.mxu0 0.0
        %1075 = vmatpush1.xpose.msra.mxu0 0.0
        %1076 = vmatprep.subr.mxu0 0.0
        %1077 = vmatpush1.xpose.msra.mxu0 0.0
        %1078 = vmatprep.subr.mxu0 0.0
        %1079 = vmatpush1.xpose.msra.mxu0 0.0
        %1080 = vmatprep.subr.mxu0 0.0
        %1081 = vmatpush1.xpose.msra.mxu0 0.0
        %1082 = vmatprep.subr.mxu0 0.0
        %1083 = vmatpush1.xpose.msra.mxu0 0.0
        %1084 = vmatprep.subr.mxu0 0.0
        %1085 = vmatpush1.xpose.msra.mxu0 0.0
        %1086 = vmatprep.subr.mxu0 0.0
        %1087 = vmatpush1.xpose.msra.mxu0 0.0
        %1088 = vmatprep.subr.mxu0 0.0
        %1089 = vmatpush1.xpose.msra.mxu0 0.0
        %1090 = vmatprep.subr.mxu0 0.0
        %1091 = vmatpush1.xpose.msra.mxu0 0.0
        %1092 = vmatprep.subr.mxu0 0.0
        %1093 = vmatpush1.xpose.msra.mxu0 %v351
        %1094 = vmatprep.subr.mxu0 0.0
        %1095 = vmatpush1.xpose.msra.mxu0 %v348
        %1096 = vmatprep.subr.mxu0 0.0
        %1097 = vmatpush1.xpose.msra.mxu0 %v345
        %1098 = vmatprep.subr.mxu0 0.0
        %1099 = vmatpush1.xpose.msra.mxu0 %v342
        %1100 = vmatprep.subr.mxu0 0.0
        %1101 = vmatpush1.xpose.msra.mxu0 %v339
        %1102 = vmatprep.subr.mxu0 0.0
        %1103 = vmatpush1.xpose.msra.mxu0 %v336
        %1104 = vmatprep.subr.mxu0 0.0
        %1105 = vmatpush2.xpose.msra.mxu0 0.0
        %1106 = vmatprep.subr.mxu0 0.0
        %1107 = vmatpush2.xpose.msra.mxu0 0.0
        %1108 = vmatprep.subr.mxu0 0.0
        %1109 = vmatpush2.xpose.msra.mxu0 0.0
        %1110 = vmatprep.subr.mxu0 0.0
        %1111 = vmatpush2.xpose.msra.mxu0 0.0
        %1112 = vmatprep.subr.mxu0 0.0
        %1113 = vmatpush2.xpose.msra.mxu0 0.0
        %1114 = vmatprep.subr.mxu0 0.0
        %1115 = vmatpush2.xpose.msra.mxu0 0.0
        %1116 = vmatprep.subr.mxu0 0.0
        %1117 = vmatpush2.xpose.msra.mxu0 0.0
        %1118 = vmatprep.subr.mxu0 0.0
        %1119 = vmatpush2.xpose.msra.mxu0 0.0
        %1120 = vmatprep.subr.mxu0 0.0
        %1121 = vmatpush2.xpose.msra.mxu0 0.0
        %1122 = vmatprep.subr.mxu0 0.0
        %1123 = vmatpush2.xpose.msra.mxu0 0.0
        %1124 = vmatprep.subr.mxu0 0.0
        %1125 = vmatpush2.xpose.msra.mxu0 0.0
        %1126 = vmatprep.subr.mxu0 0.0
        %1127 = vmatpush2.xpose.msra.mxu0 0.0
        %1128 = vmatprep.subr.mxu0 0.0
        %1129 = vmatpush2.xpose.msra.mxu0 0.0
        %1130 = vmatprep.subr.mxu0 0.0
        %1131 = vmatpush2.xpose.msra.mxu0 0.0
        %1132 = vmatprep.subr.mxu0 0.0
        %1133 = vmatpush2.xpose.msra.mxu0 0.0
        %1134 = vmatprep.subr.mxu0 0.0
        %1135 = vmatpush2.xpose.msra.mxu0 0.0
        %1136 = vmatprep.mubr.f32.mxu0 0.0
        %1137 = vmatmul.mubr.f32.gmra.mxu0 %v1001
        %v1138 = vpop.f32.mrf.mxu0
        %v1139 = vadd.f32 %v1069, %v1138
        %v1140 = vpop.f32.mrf.mxu0
        %1141 = vdwg.mxu0
        %1142 = vst.msk [vmem:[%s314] sm:$0xff] %vm613, %v1139
        %s1143 = sand.u32 %s188, 1
        %s1144 = scalar_lea.sflag [#allocation4], %s1143
        %s1145 = sand.u32 %s188, 1
        %s1146 = smul.addr %s1145, 8
        %s1147 = scalar_lea.vmem [#allocation7], %s1146
        // Predicated region
        $region57: #{tpu_custom_call.1} parent=47 // pred_check
          %p1148 = pneg %p198
        $region58: #{tpu_custom_call.1} parent=47 // pred_check_branch
          %1150 = sbr.rel (%p1148) target = $region60
        $region59: #{tpu_custom_call.1} parent=47 // pred_region
          %s1152 = ssub.s32 128, 128
          %1153 = vsyncadd %s1144, %s1152
          %s1154 = smul.addr %s23, 128
          %s1155 = scalar_lea.hbm %s7, %s1154
          %s1157 = sshll.u32 %s1147, 4
          %s1158 = int_to_ptr.vmem [resolvable:$true] %s1157
          %1160 = dma.vmem_to_hbm [thread:$0]  %s1158, 128, %s1155, %s1144
        $region60: #{tpu_custom_call.1} parent=47 // pred_fallthru
          _
      $region48: #{tpu_custom_call.1} parent=5 // pred_fallthru
        _
      %p1161 = scmp.le.s32.totalorder 2, %s18
      // Predicated region
      $region61: #{tpu_custom_call.1} parent=5 // pred_check
        %p1162 = pneg %p1161
      $region62: #{tpu_custom_call.1} parent=5 // pred_check_branch
        %1164 = sbr.rel (%p1162) target = $region64
      $region63: #{tpu_custom_call.1} parent=5 // pred_region
        %s1165 = ssub.s32 %s18, 2
        // Predicated region
        $region65: #{tpu_custom_call.1} parent=63 // pred_check
          %p1166 = pneg %p204
        $region66: #{tpu_custom_call.1} parent=63 // pred_check_branch
          %1168 = sbr.rel (%p1166) target = $region68
        $region67: #{tpu_custom_call.1} parent=63 // pred_region
          %s1169 = sand.u32 %s189, 1
          %s1170 = scalar_lea.sflag [#allocation4], %s1169
          %s1171 = sand.u32 %s189, 1
          %s1172 = smul.addr %s1171, 8
          %s1173 = scalar_lea.vmem [#allocation7], %s1172
          %1174 = dma.done %s1170, 128
        $region68: #{tpu_custom_call.1} parent=63 // pred_fallthru
          _
      $region64: #{tpu_custom_call.1} parent=5 // pred_fallthru
        _
    $region6: #{tpu_custom_call.1} parent=1 // loop_footer
      %s22 = sadd.s32 1, %s18
    $region7: #{tpu_custom_call.1} parent=1 // loop_footer_branch
      %17 = sbr.rel target = $region3
    $region8: #{tpu_custom_call.1} parent=1 // loop_exit
      _
    %1175 = vsyncpa [#allocation3], 1
    %s1176 = scalar_lea.sflag [#allocation3], 1
    %1177 = vsyncpa %s1176, 1
    %1178 = vsyncpa [#allocation6], 1
    %1179 = vsyncpa [#allocation4], 1
    %s1180 = scalar_lea.sflag [#allocation4], 1
    %1181 = vsyncpa %s1180, 1

</llo_original>
